<compile_context>
chip_gen: v7x
topology: tpu7x:2x2x1
jax: 0.10.0
libtpu: 0.0.40
codegen_flags: <defaults>
</compile_context>

<pallas_src>
import jax
import jax.numpy as jnp
from jax.experimental import pallas as pl
from jax.experimental.pallas import tpu as pltpu

LANE = 128            # lane width; output columns padded to a multiple of this
_MIN_FULL_TILE = 256  # fills the 256x256 MXU M-dim on v6e/v7x for layers 2/3
_MAX_TILE = 512       # cap: keeps per-step VMEM ~1 MiB and >=2 steps for v7x


def _round_up(x, m):
    return ((x + m - 1) // m) * m


def _choose_tile_b(batch):
    """Adaptive batch tile (multiple of 8, <= _MAX_TILE).

    - batch <= 256  -> one tile covering the whole padded batch.
    - batch  > 256  -> ~half the batch per tile (>= 2 grid steps so the
      "parallel" grid axis shards across v7x's two TensorCores), capped at 512.
    """
    b8 = _round_up(max(int(batch), 1), 8)
    if b8 <= _MIN_FULL_TILE:
        return b8
    half = _round_up(pl.cdiv(b8, 2), 8)
    return min(_MAX_TILE, half)


def dqn_kernel(x_ref, w1_ref, b1_ref, w2_ref, b2_ref, w3_ref, b3_ref, out_ref):
    # One fused batch tile: three MXU matmuls (bf16 in, f32 acc) + f32 bias/ReLU.
    x = x_ref[...].astype(jnp.bfloat16)   # in-kernel cast (hidden under MXU/DMA slack)

    h1 = jnp.dot(x, w1_ref[...], preferred_element_type=jnp.float32) + b1_ref[...]
    h1 = jnp.maximum(h1, 0.0).astype(jnp.bfloat16)

    h2 = jnp.dot(h1, w2_ref[...], preferred_element_type=jnp.float32) + b2_ref[...]
    h2 = jnp.maximum(h2, 0.0).astype(jnp.bfloat16)

    out = jnp.dot(h2, w3_ref[...], preferred_element_type=jnp.float32) + b3_ref[...]
    out_ref[...] = out.astype(out_ref.dtype)   # lane-dense bf16 store


def prepare_params(params):
    """One-time conversion of PyTorch-layout params to kernel layout.

    Weights -> (in_features, out_features) bf16; biases -> (1, out) f32.
    Layer-3 weight/bias are zero-padded so the output width is a multiple of
    LANE (lane-dense unmasked stores); works for any n_actions.
    """
    hidden = params["w2"].shape[0]
    n_actions = params["w3"].shape[0]
    lane_out = _round_up(n_actions, LANE)
    pad = lane_out - n_actions

    w1 = jnp.asarray(params["w1"]).T.astype(jnp.bfloat16)            # (obs, hidden)
    w2 = jnp.asarray(params["w2"]).T.astype(jnp.bfloat16)            # (hidden, hidden)
    w3 = jnp.pad(jnp.asarray(params["w3"]).T, ((0, 0), (0, pad)))    # (hidden, lane_out)
    w3 = w3.astype(jnp.bfloat16)

    b1 = jnp.asarray(params["b1"], jnp.float32)[None, :]             # (1, hidden)
    b2 = jnp.asarray(params["b2"], jnp.float32)[None, :]             # (1, hidden)
    b3 = jnp.pad(jnp.asarray(params["b3"], jnp.float32), (0, pad))[None, :]  # (1, lane_out)

    return {"w1": w1, "b1": b1, "w2": w2, "b2": b2, "w3": w3, "b3": b3,
            "n_actions": n_actions, "hidden": hidden, "lane_out": lane_out}


@jax.jit
def _dqn_forward_padded_impl(x, w1, b1, w2, b2, w3, b3):
    B, n_obs = x.shape
    hidden = w1.shape[1]
    lane_out = w3.shape[1]

    tile_b = _choose_tile_b(B)
    num_tiles = pl.cdiv(B, tile_b)
    b_pad = num_tiles * tile_b
    if b_pad != B:
        x = jnp.pad(x, ((0, b_pad - B), (0, 0)))

    # Weights/biases: constant index_map + full-array block => stay resident in
    # VMEM across all batch tiles (no re-DMA).
    resident = lambda shape: pl.BlockSpec(shape, lambda i: (0,) * len(shape))

    return pl.pallas_call(
        dqn_kernel,
        out_shape=jax.ShapeDtypeStruct((b_pad, lane_out), jnp.bfloat16),
        grid=(num_tiles,),
        in_specs=[
            pl.BlockSpec((tile_b, n_obs), lambda i: (i, 0)),  # streamed x tiles
            resident((n_obs, hidden)),
            resident((1, hidden)),
            resident((hidden, hidden)),
            resident((1, hidden)),
            resident((hidden, lane_out)),
            resident((1, lane_out)),
        ],
        out_specs=pl.BlockSpec((tile_b, lane_out), lambda i: (i, 0)),
        compiler_params=pltpu.CompilerParams(
            dimension_semantics=("parallel",)),
    )(x, w1, b1, w2, b2, w3, b3)


def dqn_forward_padded(x, prepped):
    """Hot-path entry: returns the padded (b_pad, lane_out) bf16 Q slab.

    Consumers (argmax action selection, TD-target gather) should read only the
    first n_actions columns / first B rows; no extra copy is made here.
    """
    return _dqn_forward_padded_impl(
        x, prepped["w1"], prepped["b1"], prepped["w2"], prepped["b2"],
        prepped["w3"], prepped["b3"])


def dqn_forward(x, prepped):
    """API-compatible forward: x (B, n_observations) -> (B, n_actions) bf16 Q-values."""
    q_pad = dqn_forward_padded(x, prepped)
    return q_pad[:x.shape[0], :prepped["n_actions"]]


def init_params(key, n_observations, n_actions, hidden=128):
    """PyTorch nn.Linear-style init (uniform +/- 1/sqrt(fan_in)), PyTorch layout."""
    ks = jax.random.split(key, 6)

    def linear_init(kw, kb, fan_in, fan_out):
        bound = 1.0 / jnp.sqrt(fan_in)
        w = jax.random.uniform(kw, (fan_out, fan_in), jnp.float32, -bound, bound)
        b = jax.random.uniform(kb, (fan_out,), jnp.float32, -bound, bound)
        return w, b

    w1, b1 = linear_init(ks[0], ks[1], n_observations, hidden)
    w2, b2 = linear_init(ks[2], ks[3], hidden, hidden)
    w3, b3 = linear_init(ks[4], ks[5], hidden, n_actions)
    return {"w1": w1, "b1": b1, "w2": w2, "b2": b2, "w3": w3, "b3": b3}


def dqn_reference_bf16(x, params):
    """Reference mirroring the kernel numerics (bf16 matmul inputs, f32 accum)."""
    def lin(h, w, b):
        return jnp.dot(h.astype(jnp.bfloat16), w.T.astype(jnp.bfloat16),
                       preferred_element_type=jnp.float32) + b
    h1 = jnp.maximum(lin(x, params["w1"], params["b1"]), 0.0)
    h2 = jnp.maximum(lin(h1, params["w2"], params["b2"]), 0.0)
    return lin(h2, params["w3"], params["b3"])


def dqn_reference_f32(x, params):
    h1 = jnp.maximum(x @ params["w1"].T + params["b1"], 0.0)
    h2 = jnp.maximum(h1 @ params["w2"].T + params["b2"], 0.0)
    return h2 @ params["w3"].T + params["b3"]


if __name__ == "__main__":
    # Snake DQN-like shapes (11-dim state, 4 actions, hidden=128 per module default).
    n_observations, n_actions, hidden = 11, 4, 128

    key = jax.random.PRNGKey(0)
    k_params, k_x_small, k_x_big = jax.random.split(key, 3)
    params = init_params(k_params, n_observations, n_actions, hidden)
    prepped = prepare_params(params)

    # Small batch (single tile) and a larger batch (2 tiles + batch padding).
    for batch, kx in ((6, k_x_small), (520, k_x_big)):
        x = jax.random.normal(kx, (batch, n_observations), jnp.float32)

        out = jax.block_until_ready(dqn_forward(x, prepped))
        assert out.shape == (batch, n_actions)
        assert out.dtype == jnp.bfloat16

        out_f32 = out.astype(jnp.float32)
        ref_bf16 = dqn_reference_bf16(x, params).astype(jnp.bfloat16).astype(jnp.float32)
        ref_f32 = dqn_reference_f32(x, params)
        assert jnp.allclose(out_f32, ref_bf16, atol=2e-2, rtol=2e-2), \
            f"mismatch vs bf16 reference (batch={batch})"
        assert jnp.allclose(out_f32, ref_f32, atol=1e-1, rtol=1e-1), \
            f"mismatch vs f32 reference (batch={batch})"

        # Padded-slab path (no wrapper slice) used for action selection / TD targets.
        q_pad = jax.block_until_ready(dqn_forward_padded(x, prepped))
        assert q_pad.shape[1] == prepped["lane_out"]
        assert jnp.allclose(q_pad[:batch, :n_actions].astype(jnp.float32), out_f32)

    print("KERNEL_OK")
</pallas_src>

<mosaic_0001>
module attributes {stable_mosaic.version = 11 : i64} {
  func.func @dqn_kernel(%arg0: i32, %arg1: memref<8x11xf32, #tpu.memory_space<vmem>>, %arg2: memref<11x128xbf16, #tpu.memory_space<vmem>>, %arg3: memref<1x128xf32, #tpu.memory_space<vmem>>, %arg4: memref<128x128xbf16, #tpu.memory_space<vmem>>, %arg5: memref<1x128xf32, #tpu.memory_space<vmem>>, %arg6: memref<128x128xbf16, #tpu.memory_space<vmem>>, %arg7: memref<1x128xf32, #tpu.memory_space<vmem>>, %arg8: memref<8x128xbf16, #tpu.memory_space<vmem>>) attributes {dimension_semantics = [#tpu.dimension_semantics<parallel>], iteration_bounds = array<i64: 1>, scalar_prefetch = 0 : i64, scratch_operands = 0 : i64, tpu.core_type = #tpu.core_type<tc>, window_params = [{transform_indices = @transform_0, window_bounds = array<i64: 8, 11>}, {pipeline_mode = #tpu.pipeline_mode<synchronous>, transform_indices = @transform_1, window_bounds = array<i64: 11, 128>}, {pipeline_mode = #tpu.pipeline_mode<synchronous>, transform_indices = @transform_2, window_bounds = array<i64: 1, 128>}, {pipeline_mode = #tpu.pipeline_mode<synchronous>, transform_indices = @transform_3, window_bounds = array<i64: 128, 128>}, {pipeline_mode = #tpu.pipeline_mode<synchronous>, transform_indices = @transform_4, window_bounds = array<i64: 1, 128>}, {pipeline_mode = #tpu.pipeline_mode<synchronous>, transform_indices = @transform_5, window_bounds = array<i64: 128, 128>}, {pipeline_mode = #tpu.pipeline_mode<synchronous>, transform_indices = @transform_6, window_bounds = array<i64: 1, 128>}, {transform_indices = @transform_7, window_bounds = array<i64: 8, 128>}]} {
    %c0 = arith.constant 0 : index
    %c0_0 = arith.constant 0 : index
    %0 = vector.load %arg1[%c0, %c0_0] : memref<8x11xf32, #tpu.memory_space<vmem>>, vector<8x11xf32>
    %1 = arith.truncf %0 : vector<8x11xf32> to vector<8x11xbf16>
    %c0_1 = arith.constant 0 : index
    %c0_2 = arith.constant 0 : index
    %2 = vector.load %arg2[%c0_1, %c0_2] : memref<11x128xbf16, #tpu.memory_space<vmem>>, vector<11x128xbf16>
    %cst = arith.constant dense<0.000000e+00> : vector<8x128xf32>
    %3 = tpu.matmul %1, %2, %cst {dimension_numbers = #tpu.dot_dimension_numbers<[1], [0], [0], [1], [0, 0, 1, 1], [], []>} : vector<8x11xbf16>, vector<11x128xbf16>, vector<8x128xf32> -> vector<8x128xf32>
    %c0_3 = arith.constant 0 : index
    %c0_4 = arith.constant 0 : index
    %4 = vector.load %arg3[%c0_3, %c0_4] : memref<1x128xf32, #tpu.memory_space<vmem>>, vector<1x128xf32>
    %5 = vector.broadcast %4 : vector<1x128xf32> to vector<8x128xf32>
    %6 = arith.addf %3, %5 : vector<8x128xf32>
    %cst_5 = arith.constant 0.000000e+00 : f32
    %7 = vector.broadcast %cst_5 : f32 to vector<8x128xf32>
    %8 = arith.maximumf %6, %7 : vector<8x128xf32>
    %9 = arith.truncf %8 : vector<8x128xf32> to vector<8x128xbf16>
    %c0_6 = arith.constant 0 : index
    %c0_7 = arith.constant 0 : index
    %10 = vector.load %arg4[%c0_6, %c0_7] : memref<128x128xbf16, #tpu.memory_space<vmem>>, vector<128x128xbf16>
    %cst_8 = arith.constant dense<0.000000e+00> : vector<8x128xf32>
    %11 = tpu.matmul %9, %10, %cst_8 {dimension_numbers = #tpu.dot_dimension_numbers<[1], [0], [0], [1], [0, 0, 1, 1], [], []>} : vector<8x128xbf16>, vector<128x128xbf16>, vector<8x128xf32> -> vector<8x128xf32>
    %c0_9 = arith.constant 0 : index
    %c0_10 = arith.constant 0 : index
    %12 = vector.load %arg5[%c0_9, %c0_10] : memref<1x128xf32, #tpu.memory_space<vmem>>, vector<1x128xf32>
    %13 = vector.broadcast %12 : vector<1x128xf32> to vector<8x128xf32>
    %14 = arith.addf %11, %13 : vector<8x128xf32>
    %cst_11 = arith.constant 0.000000e+00 : f32
    %15 = vector.broadcast %cst_11 : f32 to vector<8x128xf32>
    %16 = arith.maximumf %14, %15 : vector<8x128xf32>
    %17 = arith.truncf %16 : vector<8x128xf32> to vector<8x128xbf16>
    %c0_12 = arith.constant 0 : index
    %c0_13 = arith.constant 0 : index
    %18 = vector.load %arg6[%c0_12, %c0_13] : memref<128x128xbf16, #tpu.memory_space<vmem>>, vector<128x128xbf16>
    %cst_14 = arith.constant dense<0.000000e+00> : vector<8x128xf32>
    %19 = tpu.matmul %17, %18, %cst_14 {dimension_numbers = #tpu.dot_dimension_numbers<[1], [0], [0], [1], [0, 0, 1, 1], [], []>} : vector<8x128xbf16>, vector<128x128xbf16>, vector<8x128xf32> -> vector<8x128xf32>
    %c0_15 = arith.constant 0 : index
    %c0_16 = arith.constant 0 : index
    %20 = vector.load %arg7[%c0_15, %c0_16] : memref<1x128xf32, #tpu.memory_space<vmem>>, vector<1x128xf32>
    %21 = vector.broadcast %20 : vector<1x128xf32> to vector<8x128xf32>
    %22 = arith.addf %19, %21 : vector<8x128xf32>
    %23 = arith.truncf %22 : vector<8x128xf32> to vector<8x128xbf16>
    %c0_17 = arith.constant 0 : index
    %c0_18 = arith.constant 0 : index
    %24 = vector.load %arg8[%c0_17, %c0_18] : memref<8x128xbf16, #tpu.memory_space<vmem>>, vector<8x128xbf16>
    tpu.vector_store %arg8[%c0_17, %c0_18], %23 {strides = array<i32>} : memref<8x128xbf16, #tpu.memory_space<vmem>>, vector<8x128xbf16>,
    return
  }
  func.func @transform_0(%arg0: i32) -> (i32, i32) {
    %c0_i32 = arith.constant 0 : i32
    %c0_i32_0 = arith.constant 0 : i32
    return %arg0, %c0_i32 : i32, i32
  }
  func.func @transform_1(%arg0: i32) -> (i32, i32) {
    %c0_i32 = arith.constant 0 : i32
    %c0_i32_0 = arith.constant 0 : i32
    %c0_i32_1 = arith.constant 0 : i32
    return %c0_i32, %c0_i32_0 : i32, i32
  }
  func.func @transform_2(%arg0: i32) -> (i32, i32) {
    %c0_i32 = arith.constant 0 : i32
    %c0_i32_0 = arith.constant 0 : i32
    %c0_i32_1 = arith.constant 0 : i32
    return %c0_i32, %c0_i32_0 : i32, i32
  }
  func.func @transform_3(%arg0: i32) -> (i32, i32) {
    %c0_i32 = arith.constant 0 : i32
    %c0_i32_0 = arith.constant 0 : i32
    %c0_i32_1 = arith.constant 0 : i32
    return %c0_i32, %c0_i32_0 : i32, i32
  }
  func.func @transform_4(%arg0: i32) -> (i32, i32) {
    %c0_i32 = arith.constant 0 : i32
    %c0_i32_0 = arith.constant 0 : i32
    %c0_i32_1 = arith.constant 0 : i32
    return %c0_i32, %c0_i32_0 : i32, i32
  }
  func.func @transform_5(%arg0: i32) -> (i32, i32) {
    %c0_i32 = arith.constant 0 : i32
    %c0_i32_0 = arith.constant 0 : i32
    %c0_i32_1 = arith.constant 0 : i32
    return %c0_i32, %c0_i32_0 : i32, i32
  }
  func.func @transform_6(%arg0: i32) -> (i32, i32) {
    %c0_i32 = arith.constant 0 : i32
    %c0_i32_0 = arith.constant 0 : i32
    %c0_i32_1 = arith.constant 0 : i32
    return %c0_i32, %c0_i32_0 : i32, i32
  }
  func.func @transform_7(%arg0: i32) -> (i32, i32) {
    %c0_i32 = arith.constant 0 : i32
    %c0_i32_0 = arith.constant 0 : i32
    return %arg0, %c0_i32 : i32, i32
  }
}

</mosaic_0001>

<llo_original>
// kernel: _dqn_forward_padded_impl.1
$region0: #{_dqn_forward_padded_impl.1}
  #allocation0 [shape = 'u32[]', space=smem, size = 0x4, offset = 0x4, fixed_abs, tag = 'smem constant byte address 0x4 - core index']
  #allocation1 [shape = 'u32[144,128]{1,0:T(1,128)}', space=vmem, size = 0x12000, scoped, tag = 'internal scratch']
  %s0 = inlined_call_operand.vmem [shape: f32[8,11], index: 0, kind: input, shape index: {}]
  %s1 = inlined_call_operand.vmem [shape: bf16[11,128], index: 1, kind: input, shape index: {}]
  %s2 = inlined_call_operand.vmem [shape: f32[1,128], index: 2, kind: input, shape index: {}]
  %s3 = inlined_call_operand.hbm [shape: bf16[128,128], index: 3, kind: input, shape index: {}]
  %s4 = inlined_call_operand.vmem [shape: f32[1,128], index: 4, kind: input, shape index: {}]
  %s5 = inlined_call_operand.hbm [shape: bf16[128,128], index: 5, kind: input, shape index: {}]
  %s6 = inlined_call_operand.vmem [shape: f32[1,128], index: 6, kind: input, shape index: {}]
  %s7 = inlined_call_operand.hbm [shape: bf16[8,128], index: 7, kind: output, shape index: {}]
  %s8 = sld [smem:[#allocation0]]
  $region46: #{_dqn_forward_padded_impl.1} parent=0
    _
  %s10 = ssub.s32 1, %s8
  %s11 = scalar_select 0, %s10, %s8
  $region1: #{_dqn_forward_padded_impl.1} parent=0
    #allocation2 [shape = 'u8[32768]{0}', space=vmem, size = 0x8000, scoped, tag = 'input window, operand 3, single buffered']
    #allocation3 [shape = 's32[1]{0}', space=sflag, size = 0x4, scoped, tag = 'scoped memory for _dqn_forward_padded_impl.1']
    #allocation4 [shape = 's32[1]{0}', space=sflag, size = 0x4, scoped, tag = 'scoped memory for _dqn_forward_padded_impl.1']
    #allocation5 [shape = 'u8[32768]{0}', space=vmem, size = 0x8000, scoped, tag = 'input window, operand 5, single buffered']
    #allocation6 [shape = 's32[1]{0}', space=sflag, size = 0x4, scoped, tag = 'scoped memory for _dqn_forward_padded_impl.1']
    #allocation7 [shape = 'u8[2048]{0}', space=vmem, size = 0x800, scoped, tag = 'output window, operand 0, single buffered']
    %12 = vsyncpa [#allocation3], 0
    %13 = vsyncpa [#allocation6], 0
    %14 = vsyncpa [#allocation4], 0
    // Predicated region
    $region2: #{_dqn_forward_padded_impl.1} parent=1 // pred_check
      _
    $region3: #{_dqn_forward_padded_impl.1} parent=1 // pred_check_branch
      %16 = sbr.rel (0) target = $region5
    $region4: #{_dqn_forward_padded_impl.1} parent=1 // pred_region
      _
    $region5: #{_dqn_forward_padded_impl.1} parent=1 // pred_fallthru
      _
    // Predicated region
    $region6: #{_dqn_forward_padded_impl.1} parent=1 // pred_check
      _
    $region7: #{_dqn_forward_padded_impl.1} parent=1 // pred_check_branch
      %18 = sbr.rel (0) target = $region9
    $region8: #{_dqn_forward_padded_impl.1} parent=1 // pred_region
      _
    $region9: #{_dqn_forward_padded_impl.1} parent=1 // pred_fallthru
      _
    // Predicated region
    $region10: #{_dqn_forward_padded_impl.1} parent=1 // pred_check
      _
    $region11: #{_dqn_forward_padded_impl.1} parent=1 // pred_check_branch
      %20 = sbr.rel (0) target = $region13
    $region12: #{_dqn_forward_padded_impl.1} parent=1 // pred_region
      _
    $region13: #{_dqn_forward_padded_impl.1} parent=1 // pred_fallthru
      _
    // Predicated region
    $region14: #{_dqn_forward_padded_impl.1} parent=1 // pred_check
      _
    $region15: #{_dqn_forward_padded_impl.1} parent=1 // pred_check_branch
      %22 = sbr.rel (0) target = $region17
    $region16: #{_dqn_forward_padded_impl.1} parent=1 // pred_region
      %s24 = ssub.s32 1024, 1024
      %25 = vsyncadd [#allocation3], %s24
      %s26 = sshll.u32 [#allocation2], 4
      %s27 = int_to_ptr.vmem [resolvable:$true] %s26
      %32 = dma.hbm_to_vmem [thread:$0]  %s3, 1024, %s27, [#allocation3], 64, 64, 4
    $region17: #{_dqn_forward_padded_impl.1} parent=1 // pred_fallthru
      _
    // Predicated region
    $region18: #{_dqn_forward_padded_impl.1} parent=1 // pred_check
      _
    $region19: #{_dqn_forward_padded_impl.1} parent=1 // pred_check_branch
      %34 = sbr.rel (0) target = $region21
    $region20: #{_dqn_forward_padded_impl.1} parent=1 // pred_region
      _
    $region21: #{_dqn_forward_padded_impl.1} parent=1 // pred_fallthru
      _
    // Predicated region
    $region22: #{_dqn_forward_padded_impl.1} parent=1 // pred_check
      _
    $region23: #{_dqn_forward_padded_impl.1} parent=1 // pred_check_branch
      %36 = sbr.rel (0) target = $region25
    $region24: #{_dqn_forward_padded_impl.1} parent=1 // pred_region
      %s38 = ssub.s32 1024, 1024
      %39 = vsyncadd [#allocation6], %s38
      %s40 = sshll.u32 [#allocation5], 4
      %s41 = int_to_ptr.vmem [resolvable:$true] %s40
      %46 = dma.hbm_to_vmem [thread:$0]  %s5, 1024, %s41, [#allocation6], 64, 64, 4
    $region25: #{_dqn_forward_padded_impl.1} parent=1 // pred_fallthru
      _
    // Predicated region
    $region26: #{_dqn_forward_padded_impl.1} parent=1 // pred_check
      _
    $region27: #{_dqn_forward_padded_impl.1} parent=1 // pred_check_branch
      %48 = sbr.rel (0) target = $region29
    $region28: #{_dqn_forward_padded_impl.1} parent=1 // pred_region
      _
    $region29: #{_dqn_forward_padded_impl.1} parent=1 // pred_fallthru
      _
    // Predicated region
    $region30: #{_dqn_forward_padded_impl.1} parent=1 // pred_check
      _
    $region31: #{_dqn_forward_padded_impl.1} parent=1 // pred_check_branch
      %50 = sbr.rel (0) target = $region33
    $region32: #{_dqn_forward_padded_impl.1} parent=1 // pred_region
      %51 = dma.done [#allocation3], 1024
    $region33: #{_dqn_forward_padded_impl.1} parent=1 // pred_fallthru
      _
    // Predicated region
    $region34: #{_dqn_forward_padded_impl.1} parent=1 // pred_check
      _
    $region35: #{_dqn_forward_padded_impl.1} parent=1 // pred_check_branch
      %53 = sbr.rel (0) target = $region37
    $region36: #{_dqn_forward_padded_impl.1} parent=1 // pred_region
      %54 = dma.done [#allocation6], 1024
    $region37: #{_dqn_forward_padded_impl.1} parent=1 // pred_fallthru
      _
    %v56 = vld [vmem:[%s0] sm:$0xff]
    %v57 = vpack.c.bf16 %v56, %v56
    %v58 = vld [vmem:[%s1] sm:$0xf]
    %v59 = vld [vmem:[%s1 + $0x4] sm:$0x3]
    %v60 = vld [vmem:[%s2] sm:$0x1]
    %v62 = vlaneseq
    %v63 = vshrl.u32 %v62, 7
    %v64 = vsub.s32 0, %v63
    %v65 = vrot.slane %v60, %v64
    %v69 = vunpack.c.l.b16 %v58
    %v70 = vunpack.c.l.b16 %v59
    %v71 = vpack.c.b16 %v70, %v69
    %vm72 = vcmask 89088
    %v74 = vsel %vm72, %v57, 0
    %vm76 = vcmask 1044480
    %vm77 = vcmask 1045504
    %v78 = vsel %vm76, 4294967295, 65535
    %v79 = vsel %vm77, %v78, 0
    %v81 = vand.u32 %v71, %v79
    %83 = vmatprep.subr.bf16.mxu0 0
    %84 = vmatpush1.bf16.msra.mxu0 %v81
    %85 = vmatprep.subr.bf16.mxu0 0
    %86 = vmatpush1.bf16.msra.mxu0 0
    %87 = vmatprep.subr.bf16.mxu0 0
    %88 = vmatpush1.bf16.msra.mxu0 0
    %89 = vmatprep.subr.bf16.mxu0 0
    %90 = vmatpush1.bf16.msra.mxu0 0
    %91 = vmatprep.subr.bf16.mxu0 0
    %92 = vmatpush1.bf16.msra.mxu0 0
    %93 = vmatprep.subr.bf16.mxu0 0
    %94 = vmatpush1.bf16.msra.mxu0 0
    %95 = vmatprep.subr.bf16.mxu0 0
    %96 = vmatpush1.bf16.msra.mxu0 0
    %97 = vmatprep.subr.bf16.mxu0 0
    %98 = vmatpush1.bf16.msra.mxu0 0
    %99 = vmatprep.subr.bf16.mxu0 0
    %100 = vmatpush1.bf16.msra.mxu0 0
    %101 = vmatprep.subr.bf16.mxu0 0
    %102 = vmatpush1.bf16.msra.mxu0 0
    %103 = vmatprep.subr.bf16.mxu0 0
    %104 = vmatpush1.bf16.msra.mxu0 0
    %105 = vmatprep.subr.bf16.mxu0 0
    %106 = vmatpush1.bf16.msra.mxu0 0
    %107 = vmatprep.subr.bf16.mxu0 0
    %108 = vmatpush1.bf16.msra.mxu0 0
    %109 = vmatprep.subr.bf16.mxu0 0
    %110 = vmatpush1.bf16.msra.mxu0 0
    %111 = vmatprep.subr.bf16.mxu0 0
    %112 = vmatpush1.bf16.msra.mxu0 0
    %113 = vmatprep.subr.bf16.mxu0 0
    %114 = vmatpush1.bf16.msra.mxu0 0
    %115 = vmatprep.mubr.bf16.mxu0 0
    %116 = vmatmul.mubr.bf16.gmra.mrb[0].mxu0 %v74
    %v117 = vpop.f32.mrb[0].mxu0
    %v118 = vadd.f32 %v65, %v117
    %v119 = vpop.f32.mrb[0].mxu0
    %v120 = vpop.f32.mrb[0].mxu0
    %v121 = vpop.f32.mrb[0].mxu0
    %122 = vdwg.mxu0
    %v123 = vmax.f32 %v118, 0.0
    %v124 = vpack.c.bf16 %v123, %v123
    %v125 = vld [vmem:[#allocation2] sm:$0xf]
    %v126 = vld [vmem:[#allocation2 + $0x4] sm:$0xf]
    %v127 = vld [vmem:[#allocation2 + $0x8] sm:$0xf]
    %v128 = vld [vmem:[#allocation2 + $0xc] sm:$0xf]
    %v129 = vld [vmem:[#allocation2 + $0x10] sm:$0xf]
    %v130 = vld [vmem:[#allocation2 + $0x14] sm:$0xf]
    %v131 = vld [vmem:[#allocation2 + $0x18] sm:$0xf]
    %v132 = vld [vmem:[#allocation2 + $0x1c] sm:$0xf]
    %v133 = vld [vmem:[#allocation2 + $0x20] sm:$0xf]
    %v134 = vld [vmem:[#allocation2 + $0x24] sm:$0xf]
    %v135 = vld [vmem:[#allocation2 + $0x28] sm:$0xf]
    %v136 = vld [vmem:[#allocation2 + $0x2c] sm:$0xf]
    %v137 = vld [vmem:[#allocation2 + $0x30] sm:$0xf]
    %v138 = vld [vmem:[#allocation2 + $0x34] sm:$0xf]
    %v139 = vld [vmem:[#allocation2 + $0x38] sm:$0xf]
    %v140 = vld [vmem:[#allocation2 + $0x3c] sm:$0xf]
    %v141 = vld [vmem:[%s4] sm:$0x1]
    %v143 = vlaneseq
    %v144 = vshrl.u32 %v143, 7
    %v145 = vsub.s32 0, %v144
    %v146 = vrot.slane %v141, %v145
    %v164 = vunpack.c.l.b16 %v125
    %v165 = vunpack.c.l.b16 %v126
    %v166 = vunpack.c.l.b16 %v127
    %v167 = vunpack.c.l.b16 %v128
    %v168 = vunpack.c.l.b16 %v129
    %v169 = vunpack.c.l.b16 %v130
    %v170 = vunpack.c.l.b16 %v131
    %v171 = vunpack.c.l.b16 %v132
    %v172 = vunpack.c.l.b16 %v133
    %v173 = vunpack.c.l.b16 %v134
    %v174 = vunpack.c.l.b16 %v135
    %v175 = vunpack.c.l.b16 %v136
    %v176 = vunpack.c.l.b16 %v137
    %v177 = vunpack.c.l.b16 %v138
    %v178 = vunpack.c.l.b16 %v139
    %v179 = vunpack.c.l.b16 %v140
    %v180 = vpack.c.b16 %v165, %v164
    %v181 = vpack.c.b16 %v167, %v166
    %v182 = vpack.c.b16 %v169, %v168
    %v183 = vpack.c.b16 %v171, %v170
    %v184 = vpack.c.b16 %v173, %v172
    %v185 = vpack.c.b16 %v175, %v174
    %v186 = vpack.c.b16 %v177, %v176
    %v187 = vpack.c.b16 %v179, %v178
    %196 = vmatprep.subr.bf16.mxu0 0
    %197 = vmatpush1.bf16.msra.mxu0 %v180
    %198 = vmatprep.subr.bf16.mxu0 0
    %199 = vmatpush1.bf16.msra.mxu0 %v181
    %200 = vmatprep.subr.bf16.mxu0 0
    %201 = vmatpush1.bf16.msra.mxu0 %v182
    %202 = vmatprep.subr.bf16.mxu0 0
    %203 = vmatpush1.bf16.msra.mxu0 %v183
    %204 = vmatprep.subr.bf16.mxu0 0
    %205 = vmatpush1.bf16.msra.mxu0 %v184
    %206 = vmatprep.subr.bf16.mxu0 0
    %207 = vmatpush1.bf16.msra.mxu0 %v185
    %208 = vmatprep.subr.bf16.mxu0 0
    %209 = vmatpush1.bf16.msra.mxu0 %v186
    %210 = vmatprep.subr.bf16.mxu0 0
    %211 = vmatpush1.bf16.msra.mxu0 %v187
    %212 = vmatprep.subr.bf16.mxu0 0
    %213 = vmatpush1.bf16.msra.mxu0 0
    %214 = vmatprep.subr.bf16.mxu0 0
    %215 = vmatpush1.bf16.msra.mxu0 0
    %216 = vmatprep.subr.bf16.mxu0 0
    %217 = vmatpush1.bf16.msra.mxu0 0
    %218 = vmatprep.subr.bf16.mxu0 0
    %219 = vmatpush1.bf16.msra.mxu0 0
    %220 = vmatprep.subr.bf16.mxu0 0
    %221 = vmatpush1.bf16.msra.mxu0 0
    %222 = vmatprep.subr.bf16.mxu0 0
    %223 = vmatpush1.bf16.msra.mxu0 0
    %224 = vmatprep.subr.bf16.mxu0 0
    %225 = vmatpush1.bf16.msra.mxu0 0
    %226 = vmatprep.subr.bf16.mxu0 0
    %227 = vmatpush1.bf16.msra.mxu0 0
    %228 = vmatprep.mubr.bf16.mxu0 0
    %229 = vmatmul.mubr.bf16.gmra.mrb[0].mxu0 %v124
    %v230 = vpop.f32.mrb[0].mxu0
    %v231 = vadd.f32 %v146, %v230
    %v232 = vpop.f32.mrb[0].mxu0
    %v233 = vpop.f32.mrb[0].mxu0
    %v234 = vpop.f32.mrb[0].mxu0
    %235 = vdwg.mxu0
    %v236 = vmax.f32 %v231, 0.0
    %v237 = vpack.c.bf16 %v236, %v236
    %v238 = vld [vmem:[#allocation5] sm:$0xf]
    %v239 = vld [vmem:[#allocation5 + $0x4] sm:$0xf]
    %v240 = vld [vmem:[#allocation5 + $0x8] sm:$0xf]
    %v241 = vld [vmem:[#allocation5 + $0xc] sm:$0xf]
    %v242 = vld [vmem:[#allocation5 + $0x10] sm:$0xf]
    %v243 = vld [vmem:[#allocation5 + $0x14] sm:$0xf]
    %v244 = vld [vmem:[#allocation5 + $0x18] sm:$0xf]
    %v245 = vld [vmem:[#allocation5 + $0x1c] sm:$0xf]
    %v246 = vld [vmem:[#allocation5 + $0x20] sm:$0xf]
    %v247 = vld [vmem:[#allocation5 + $0x24] sm:$0xf]
    %v248 = vld [vmem:[#allocation5 + $0x28] sm:$0xf]
    %v249 = vld [vmem:[#allocation5 + $0x2c] sm:$0xf]
    %v250 = vld [vmem:[#allocation5 + $0x30] sm:$0xf]
    %v251 = vld [vmem:[#allocation5 + $0x34] sm:$0xf]
    %v252 = vld [vmem:[#allocation5 + $0x38] sm:$0xf]
    %v253 = vld [vmem:[#allocation5 + $0x3c] sm:$0xf]
    %v254 = vld [vmem:[%s6] sm:$0x1]
    %v256 = vlaneseq
    %v257 = vshrl.u32 %v256, 7
    %v258 = vsub.s32 0, %v257
    %v259 = vrot.slane %v254, %v258
    %v277 = vunpack.c.l.b16 %v238
    %v278 = vunpack.c.l.b16 %v239
    %v279 = vunpack.c.l.b16 %v240
    %v280 = vunpack.c.l.b16 %v241
    %v281 = vunpack.c.l.b16 %v242
    %v282 = vunpack.c.l.b16 %v243
    %v283 = vunpack.c.l.b16 %v244
    %v284 = vunpack.c.l.b16 %v245
    %v285 = vunpack.c.l.b16 %v246
    %v286 = vunpack.c.l.b16 %v247
    %v287 = vunpack.c.l.b16 %v248
    %v288 = vunpack.c.l.b16 %v249
    %v289 = vunpack.c.l.b16 %v250
    %v290 = vunpack.c.l.b16 %v251
    %v291 = vunpack.c.l.b16 %v252
    %v292 = vunpack.c.l.b16 %v253
    %v293 = vpack.c.b16 %v278, %v277
    %v294 = vpack.c.b16 %v280, %v279
    %v295 = vpack.c.b16 %v282, %v281
    %v296 = vpack.c.b16 %v284, %v283
    %v297 = vpack.c.b16 %v286, %v285
    %v298 = vpack.c.b16 %v288, %v287
    %v299 = vpack.c.b16 %v290, %v289
    %v300 = vpack.c.b16 %v292, %v291
    %309 = vmatprep.subr.bf16.mxu0 0
    %310 = vmatpush1.bf16.msra.mxu0 %v293
    %311 = vmatprep.subr.bf16.mxu0 0
    %312 = vmatpush1.bf16.msra.mxu0 %v294
    %313 = vmatprep.subr.bf16.mxu0 0
    %314 = vmatpush1.bf16.msra.mxu0 %v295
    %315 = vmatprep.subr.bf16.mxu0 0
    %316 = vmatpush1.bf16.msra.mxu0 %v296
    %317 = vmatprep.subr.bf16.mxu0 0
    %318 = vmatpush1.bf16.msra.mxu0 %v297
    %319 = vmatprep.subr.bf16.mxu0 0
    %320 = vmatpush1.bf16.msra.mxu0 %v298
    %321 = vmatprep.subr.bf16.mxu0 0
    %322 = vmatpush1.bf16.msra.mxu0 %v299
    %323 = vmatprep.subr.bf16.mxu0 0
    %324 = vmatpush1.bf16.msra.mxu0 %v300
    %325 = vmatprep.subr.bf16.mxu0 0
    %326 = vmatpush1.bf16.msra.mxu0 0
    %327 = vmatprep.subr.bf16.mxu0 0
    %328 = vmatpush1.bf16.msra.mxu0 0
    %329 = vmatprep.subr.bf16.mxu0 0
    %330 = vmatpush1.bf16.msra.mxu0 0
    %331 = vmatprep.subr.bf16.mxu0 0
    %332 = vmatpush1.bf16.msra.mxu0 0
    %333 = vmatprep.subr.bf16.mxu0 0
    %334 = vmatpush1.bf16.msra.mxu0 0
    %335 = vmatprep.subr.bf16.mxu0 0
    %336 = vmatpush1.bf16.msra.mxu0 0
    %337 = vmatprep.subr.bf16.mxu0 0
    %338 = vmatpush1.bf16.msra.mxu0 0
    %339 = vmatprep.subr.bf16.mxu0 0
    %340 = vmatpush1.bf16.msra.mxu0 0
    %341 = vmatprep.mubr.bf16.mxu0 0
    %342 = vmatmul.mubr.bf16.gmra.mrb[0].mxu0 %v237
    %v343 = vpop.f32.mrb[0].mxu0
    %v344 = vadd.f32 %v259, %v343
    %v345 = vpop.f32.mrb[0].mxu0
    %v346 = vpop.f32.mrb[0].mxu0
    %v347 = vpop.f32.mrb[0].mxu0
    %348 = vdwg.mxu0
    %v349 = vpack.c.bf16 %v344, %v344
    %350 = vst [vmem:[#allocation7] sm:$0xf] %v349
    // Predicated region
    $region38: #{_dqn_forward_padded_impl.1} parent=1 // pred_check
      _
    $region39: #{_dqn_forward_padded_impl.1} parent=1 // pred_check_branch
      %352 = sbr.rel (0) target = $region41
    $region40: #{_dqn_forward_padded_impl.1} parent=1 // pred_region
      %s354 = ssub.s32 64, 64
      %355 = vsyncadd [#allocation4], %s354
      %s357 = sshll.u32 [#allocation7], 4
      %s358 = int_to_ptr.vmem [resolvable:$true] %s357
      %360 = dma.vmem_to_hbm [thread:$0]  %s358, 64, %s7, [#allocation4]
    $region41: #{_dqn_forward_padded_impl.1} parent=1 // pred_fallthru
      _
    // Predicated region
    $region42: #{_dqn_forward_padded_impl.1} parent=1 // pred_check
      _
    $region43: #{_dqn_forward_padded_impl.1} parent=1 // pred_check_branch
      %362 = sbr.rel (0) target = $region45
    $region44: #{_dqn_forward_padded_impl.1} parent=1 // pred_region
      %363 = dma.done [#allocation4], 64
    $region45: #{_dqn_forward_padded_impl.1} parent=1 // pred_fallthru
      _
    %364 = vsyncpa [#allocation3], 1
    %365 = vsyncpa [#allocation6], 1
    %366 = vsyncpa [#allocation4], 1

</llo_original>
